<compile_context>
chip_gen: v6e
topology: v6e:2x2x1
jax: 0.10.0
libtpu: 0.0.40
codegen_flags: <defaults>
</compile_context>

<pallas_src>
import jax
import jax.numpy as jnp
from jax.experimental import pallas as pl
from jax.experimental.pallas import tpu as pltpu


def _round_up(a, b):
    return ((a + b - 1) // b) * b


_SQRT_HALF = 0.7071067811865476


def _erf(z, approx_recip):
    # Abramowitz & Stegun 7.1.26 polynomial, |error| <= 1.5e-7 (f32 level).
    # Hand-rolled so only elementwise ops guaranteed to lower on the TPU
    # VPU/EUP are used (abs, exp, mul/add, select, reciprocal).
    # TODO(synk): switch to jax.lax.erf if/when the target Mosaic version is
    # confirmed to lower it natively (would shave several VALU ops/element).
    a1, a2, a3, a4, a5 = (0.254829592, -0.284496736, 1.421413741,
                          -1.453152027, 1.061405429)
    p = 0.3275911
    az = jnp.abs(z)
    d = 1.0 + p * az
    # On the low-precision (bf16-weights) path the divide becomes an EUP
    # approximate reciprocal, freeing the VALU slot that co-binds with the
    # MXU on v6e/v7x.
    t = pl.reciprocal(d, approx=True) if approx_recip else 1.0 / d
    poly = ((((a5 * t + a4) * t + a3) * t + a2) * t + a1) * t
    e = 1.0 - poly * jnp.exp(-(z * z))
    return jnp.where(z < 0, -e, e)


def _gelu_exact(x, approx_recip):
    # nn.GELU() default (approximate='none'): 0.5 * x * (1 + erf(x / sqrt(2)))
    return 0.5 * x * (1.0 + _erf(x * _SQRT_HALF, approx_recip))


def _mlp_kernel_fused(x_ref, w1_ref, b1_ref, w2_ref, b2_ref, o_ref):
    # Full weights resident in VMEM; one grid axis over token tiles.
    cdt = w1_ref.dtype
    approx = jnp.dtype(cdt) != jnp.dtype(jnp.float32)
    x = x_ref[...].astype(cdt)                       # in-kernel cast (no HBM pass)
    h = jnp.dot(x, w1_ref[...], preferred_element_type=jnp.float32) + b1_ref[...]
    h = _gelu_exact(h, approx)                       # exact GELU in f32
    y = jnp.dot(h.astype(cdt), w2_ref[...], preferred_element_type=jnp.float32)
    o_ref[...] = (y + b2_ref[...]).astype(o_ref.dtype)
    # TODO(synk): AdapterMixin hooks around fc1/fc2 are identity when no
    # adapter is attached (module default) and Dropout(p=0.0) is identity, so
    # neither is modeled here.


def _mlp_kernel_streamed(x_ref, w1_ref, b1_ref, w2_ref, b2_ref, o_ref, acc_ref):
    # Hidden dimension streamed in slabs (grid axis 1); f32 accumulator scratch.
    cdt = w1_ref.dtype
    approx = jnp.dtype(cdt) != jnp.dtype(jnp.float32)
    k = pl.program_id(1)

    @pl.when(k == 0)
    def _():
        acc_ref[...] = jnp.zeros_like(acc_ref)

    x = x_ref[...].astype(cdt)
    h = jnp.dot(x, w1_ref[...], preferred_element_type=jnp.float32) + b1_ref[...]
    h = _gelu_exact(h, approx)
    acc_ref[...] += jnp.dot(h.astype(cdt), w2_ref[...],
                            preferred_element_type=jnp.float32)

    @pl.when(k == pl.num_programs(1) - 1)
    def _():
        o_ref[...] = (acc_ref[...] + b2_ref[...]).astype(o_ref.dtype)


def _vmem_budget_bytes():
    # ~80% of per-core VMEM: v5e/v6e -> ~102 MiB, v7x -> ~51 MiB. Headroom is
    # left for Mosaic internal scratch / semaphores.
    try:
        cap = pltpu.get_tpu_info().vmem_capacity_bytes
    except Exception:
        cap = 64 * 1024 * 1024     # conservative fallback (v7x per-core size)
    return int(cap * 0.8)


def _choose_block_m(m, requested, min_steps=2):
    bm = min(int(requested), _round_up(m, 8))
    # At least `min_steps` grid steps when there is enough work so the
    # "parallel" M axis can feed both v7x TensorCores.
    if m > 8 * min_steps:
        bm = min(bm, _round_up(-(-m // min_steps), 8))
    # MXU/lane-friendly rounding: multiple of 128 for large tiles, else of 8.
    return _round_up(bm, 128) if bm >= 128 else _round_up(bm, 8)


def mlp_pallas(x, w1, b1, w2, b2, *, block_m=512, block_h=None,
               out_dtype=None, single_buffer_weights=True):
    """y = GELU(x @ w1 + b1) @ w2 + b2, fused in one Pallas kernel.

    x: (..., C_in)   w1: (C_in, H)  b1: (H,)   w2: (H, C_out)  b2: (C_out,)

    The MXU compute dtype is the *weights'* dtype (cast/store params in bf16
    once at init for the fast path); x is cast inside the kernel. Accumulation
    is always f32. When the full weights exceed the VMEM budget, the hidden
    dimension is streamed in `block_h`-wide slabs with an f32 accumulator.
    """
    if w1.dtype != w2.dtype:
        raise ValueError("w1 and w2 must share a dtype (the MXU compute dtype)")
    out_dtype = x.dtype if out_dtype is None else out_dtype

    *lead, c_in = x.shape
    hidden = w1.shape[1]
    c_out = w2.shape[1]

    x2 = x.reshape(-1, c_in)
    m = x2.shape[0]

    b1_2d = b1.reshape(1, hidden).astype(jnp.float32)
    b2_2d = b2.reshape(1, c_out).astype(jnp.float32)

    w_dtype = w1.dtype
    x_bytes = jnp.dtype(x.dtype).itemsize
    w_bytes = jnp.dtype(w_dtype).itemsize
    o_bytes = jnp.dtype(out_dtype).itemsize

    budget = _vmem_budget_bytes()
    block_m = _choose_block_m(m, block_m)

    def fits(bm, bh, wbuf):
        need = (2 * bm * c_in * x_bytes              # x tiles (double-buffered)
                + bm * c_in * w_bytes                # in-kernel x cast
                + 2 * bm * c_out * o_bytes           # out tiles
                + bm * c_out * 4                     # f32 result / accumulator
                + bm * bh * (4 + w_bytes)            # f32 hidden + cast for fc2
                + wbuf * (c_in * bh + bh * c_out) * w_bytes   # weight blocks
                + wbuf * bh * 4 + 2 * c_out * 4)              # biases
        return need <= budget

    if block_h is None:
        wbuf_full = 1 if single_buffer_weights else 2
        while True:
            if hidden % 128 != 0 or fits(block_m, hidden, wbuf_full):
                block_h = hidden                 # full weights resident
                break
            found = None
            for bh in range((hidden // 128) * 128, 127, -128):
                if hidden % bh == 0 and fits(block_m, bh, 2):
                    found = bh
                    break
            if found is not None:
                block_h = found                  # stream hidden-dim slabs
                break
            if block_m > 128:
                block_m = max(128, _round_up(block_m // 2, 128))
                continue
            # TODO(synk): even 128-wide hidden slabs at block_m=128 exceed the
            # budget for this config; proceed best-effort.
            block_h = 128
            break
    elif block_h != hidden and (hidden % block_h or block_h % 128):
        raise ValueError("block_h must divide hidden and be a multiple of 128")

    streaming = block_h < hidden

    m_pad = _round_up(m, block_m)
    if m_pad != m:
        x2 = jnp.pad(x2, ((0, m_pad - m), (0, 0)))

    def const_spec(shape, index_map):
        # Constant-index blocks: double-buffering buys nothing -> single buffer.
        if single_buffer_weights:
            return pl.BlockSpec(shape, index_map, pipeline_mode=pl.Buffered(1))
        return pl.BlockSpec(shape, index_map)

    if streaming:
        grid = (m_pad // block_m, hidden // block_h)
        in_specs = [
            pl.BlockSpec((block_m, c_in), lambda i, k: (i, 0)),      # x tile
            pl.BlockSpec((c_in, block_h), lambda i, k: (0, k)),      # W1 slab
            pl.BlockSpec((1, block_h), lambda i, k: (0, k)),         # b1 slab
            pl.BlockSpec((block_h, c_out), lambda i, k: (k, 0)),     # W2 slab
            const_spec((1, c_out), lambda i, k: (0, 0)),             # b2
        ]
        out_specs = pl.BlockSpec((block_m, c_out), lambda i, k: (i, 0))
        scratch = [pltpu.VMEM((block_m, c_out), jnp.float32)]
        kernel = _mlp_kernel_streamed
        dim_sem = ("parallel", "arbitrary")
    else:
        grid = (m_pad // block_m,)
        in_specs = [
            pl.BlockSpec((block_m, c_in), lambda i: (i, 0)),         # x tile
            const_spec((c_in, hidden), lambda i: (0, 0)),            # W1 (full)
            const_spec((1, hidden), lambda i: (0, 0)),               # b1
            const_spec((hidden, c_out), lambda i: (0, 0)),           # W2 (full)
            const_spec((1, c_out), lambda i: (0, 0)),                # b2
        ]
        out_specs = pl.BlockSpec((block_m, c_out), lambda i: (i, 0))
        scratch = []
        kernel = _mlp_kernel_fused
        dim_sem = ("parallel",)

    out = pl.pallas_call(
        kernel,
        out_shape=jax.ShapeDtypeStruct((m_pad, c_out), out_dtype),
        grid_spec=pltpu.PrefetchScalarGridSpec(
            num_scalar_prefetch=0,
            grid=grid,
            in_specs=in_specs,
            out_specs=out_specs,
            scratch_shapes=scratch,
        ),
        compiler_params=pltpu.CompilerParams(
            dimension_semantics=dim_sem,
            vmem_limit_bytes=budget),
    )(x2, w1, b1_2d, w2, b2_2d)

    if m_pad != m:
        out = out[:m]
    return out.reshape(*lead, c_out)


def mlp_reference(x, w1, b1, w2, b2):
    # Pure-JAX reference mirroring the PyTorch forward (exact erf GELU).
    h = jnp.dot(x, w1, precision=jax.lax.Precision.HIGHEST) + b1
    h = jax.nn.gelu(h, approximate=False)
    return jnp.dot(h, w2, precision=jax.lax.Precision.HIGHEST) + b2


if __name__ == "__main__":
    # Small shapes consistent with the module: tokens (B, N, C), 4x expansion.
    B, N, C_IN, HIDDEN, C_OUT = 2, 8, 64, 256, 64

    key = jax.random.PRNGKey(0)
    k_x, k_w1, k_b1, k_w2, k_b2 = jax.random.split(key, 5)

    x = jax.random.normal(k_x, (B, N, C_IN), dtype=jnp.float32)
    w1 = jax.random.normal(k_w1, (C_IN, HIDDEN), jnp.float32) / jnp.sqrt(1.0 * C_IN)
    b1 = jax.random.normal(k_b1, (HIDDEN,), jnp.float32) * 0.02
    w2 = jax.random.normal(k_w2, (HIDDEN, C_OUT), jnp.float32) / jnp.sqrt(1.0 * HIDDEN)
    b2 = jax.random.normal(k_b2, (C_OUT,), jnp.float32) * 0.02

    y_ref = mlp_reference(x, w1, b1, w2, b2)

    # 1) f32 weights, default config (fused path, single-buffered weights).
    y1 = jax.block_until_ready(mlp_pallas(x, w1, b1, w2, b2))
    assert jnp.allclose(y1, y_ref, atol=1e-3, rtol=1e-3), "f32 default mismatch"

    # 2) Small token tiles -> exercises a multi-step M grid.
    y2 = jax.block_until_ready(mlp_pallas(x, w1, b1, w2, b2, block_m=8))
    assert jnp.allclose(y2, y_ref, atol=1e-3, rtol=1e-3), "small-tile mismatch"

    # 3) Hidden-dim streaming path (weight slabs + f32 accumulator scratch).
    y3 = jax.block_until_ready(mlp_pallas(x, w1, b1, w2, b2, block_h=128))
    assert jnp.allclose(y3, y_ref, atol=1e-3, rtol=1e-3), "streamed mismatch"

    # 4) bf16 parameters (cast once, like at init) -> bf16 MXU fast path,
    #    bf16 output; x stays f32 and is cast inside the kernel.
    w1b, w2b = w1.astype(jnp.bfloat16), w2.astype(jnp.bfloat16)
    y4 = jax.block_until_ready(
        mlp_pallas(x, w1b, b1, w2b, b2, out_dtype=jnp.bfloat16))
    assert float(jnp.max(jnp.abs(y4.astype(jnp.float32) - y_ref))) < 8e-2, \
        "bf16 mismatch vs reference"

    # 5) Ragged token count -> pad/slice path.
    xr = x[:, :5, :]
    y5 = jax.block_until_ready(mlp_pallas(xr, w1, b1, w2, b2))
    assert jnp.allclose(y5, mlp_reference(xr, w1, b1, w2, b2),
                        atol=1e-3, rtol=1e-3), "ragged mismatch vs reference"

    print("KERNEL_OK")
</pallas_src>

<mosaic_0001>
module attributes {stable_mosaic.version = 11 : i64} {
  func.func @_mlp_kernel_fused(%arg0: i32, %arg1: memref<16x64xf32, #tpu.memory_space<vmem>>, %arg2: memref<64x256xf32, #tpu.memory_space<vmem>>, %arg3: memref<1x256xf32, #tpu.memory_space<vmem>>, %arg4: memref<256x64xf32, #tpu.memory_space<vmem>>, %arg5: memref<1x64xf32, #tpu.memory_space<vmem>>, %arg6: memref<16x64xf32, #tpu.memory_space<vmem>>) attributes {dimension_semantics = [#tpu.dimension_semantics<parallel>], iteration_bounds = array<i64: 1>, scalar_prefetch = 0 : i64, scratch_operands = 0 : i64, tpu.core_type = #tpu.core_type<tc>, window_params = [{transform_indices = @transform_0, window_bounds = array<i64: 16, 64>}, {pipeline_mode = #tpu.pipeline_mode<synchronous>, transform_indices = @transform_1, window_bounds = array<i64: 64, 256>}, {pipeline_mode = #tpu.pipeline_mode<synchronous>, transform_indices = @transform_2, window_bounds = array<i64: 1, 256>}, {pipeline_mode = #tpu.pipeline_mode<synchronous>, transform_indices = @transform_3, window_bounds = array<i64: 256, 64>}, {pipeline_mode = #tpu.pipeline_mode<synchronous>, transform_indices = @transform_4, window_bounds = array<i64: 1, 64>}, {transform_indices = @transform_5, window_bounds = array<i64: 16, 64>}]} {
    %c0 = arith.constant 0 : index
    %c0_0 = arith.constant 0 : index
    %0 = vector.load %arg1[%c0, %c0_0] : memref<16x64xf32, #tpu.memory_space<vmem>>, vector<16x64xf32>
    %c0_1 = arith.constant 0 : index
    %c0_2 = arith.constant 0 : index
    %1 = vector.load %arg2[%c0_1, %c0_2] : memref<64x256xf32, #tpu.memory_space<vmem>>, vector<64x256xf32>
    %cst = arith.constant dense<0.000000e+00> : vector<16x256xf32>
    %2 = tpu.matmul %0, %1, %cst {dimension_numbers = #tpu.dot_dimension_numbers<[1], [0], [0], [1], [0, 0, 1, 1], [], []>} : vector<16x64xf32>, vector<64x256xf32>, vector<16x256xf32> -> vector<16x256xf32>
    %c0_3 = arith.constant 0 : index
    %c0_4 = arith.constant 0 : index
    %3 = vector.load %arg3[%c0_3, %c0_4] : memref<1x256xf32, #tpu.memory_space<vmem>>, vector<1x256xf32>
    %4 = vector.broadcast %3 : vector<1x256xf32> to vector<16x256xf32>
    %5 = arith.addf %2, %4 : vector<16x256xf32>
    %cst_5 = arith.constant 5.000000e-01 : f32
    %6 = vector.broadcast %cst_5 : f32 to vector<16x256xf32>
    %7 = arith.mulf %6, %5 : vector<16x256xf32>
    %cst_6 = arith.constant 0.707106769 : f32
    %8 = vector.broadcast %cst_6 : f32 to vector<16x256xf32>
    %9 = arith.mulf %5, %8 : vector<16x256xf32>
    %10 = math.absf %9 : vector<16x256xf32>
    %cst_7 = arith.constant 0.327591091 : f32
    %11 = vector.broadcast %cst_7 : f32 to vector<16x256xf32>
    %12 = arith.mulf %11, %10 : vector<16x256xf32>
    %cst_8 = arith.constant 1.000000e+00 : f32
    %13 = vector.broadcast %cst_8 : f32 to vector<16x256xf32>
    %14 = arith.addf %13, %12 : vector<16x256xf32>
    %cst_9 = arith.constant 1.000000e+00 : f32
    %15 = vector.broadcast %cst_9 : f32 to vector<16x256xf32>
    %16 = arith.divf %15, %14 : vector<16x256xf32>
    %cst_10 = arith.constant 1.06140542 : f32
    %17 = vector.broadcast %cst_10 : f32 to vector<16x256xf32>
    %18 = arith.mulf %17, %16 : vector<16x256xf32>
    %cst_11 = arith.constant -1.45315206 : f32
    %19 = vector.broadcast %cst_11 : f32 to vector<16x256xf32>
    %20 = arith.addf %18, %19 : vector<16x256xf32>
    %21 = arith.mulf %20, %16 : vector<16x256xf32>
    %cst_12 = arith.constant 1.42141378 : f32
    %22 = vector.broadcast %cst_12 : f32 to vector<16x256xf32>
    %23 = arith.addf %21, %22 : vector<16x256xf32>
    %24 = arith.mulf %23, %16 : vector<16x256xf32>
    %cst_13 = arith.constant -0.284496725 : f32
    %25 = vector.broadcast %cst_13 : f32 to vector<16x256xf32>
    %26 = arith.addf %24, %25 : vector<16x256xf32>
    %27 = arith.mulf %26, %16 : vector<16x256xf32>
    %cst_14 = arith.constant 0.254829586 : f32
    %28 = vector.broadcast %cst_14 : f32 to vector<16x256xf32>
    %29 = arith.addf %27, %28 : vector<16x256xf32>
    %30 = arith.mulf %29, %16 : vector<16x256xf32>
    %31 = arith.mulf %9, %9 : vector<16x256xf32>
    %cst_15 = arith.constant 0.000000e+00 : f32
    %32 = vector.broadcast %cst_15 : f32 to vector<16x256xf32>
    %33 = arith.subf %32, %31 : vector<16x256xf32>
    %34 = math.exp %33 : vector<16x256xf32>
    %35 = arith.mulf %30, %34 : vector<16x256xf32>
    %cst_16 = arith.constant 1.000000e+00 : f32
    %36 = vector.broadcast %cst_16 : f32 to vector<16x256xf32>
    %37 = arith.subf %36, %35 : vector<16x256xf32>
    %cst_17 = arith.constant 0.000000e+00 : f32
    %38 = vector.broadcast %cst_17 : f32 to vector<16x256xf32>
    %39 = arith.cmpf olt, %9, %38 : vector<16x256xf32>
    %cst_18 = arith.constant 0.000000e+00 : f32
    %40 = vector.broadcast %cst_18 : f32 to vector<16x256xf32>
    %41 = arith.subf %40, %37 : vector<16x256xf32>
    %42 = arith.select %39, %41, %37 : vector<16x256xi1>, vector<16x256xf32>
    %cst_19 = arith.constant 1.000000e+00 : f32
    %43 = vector.broadcast %cst_19 : f32 to vector<16x256xf32>
    %44 = arith.addf %43, %42 : vector<16x256xf32>
    %45 = arith.mulf %7, %44 : vector<16x256xf32>
    %c0_20 = arith.constant 0 : index
    %c0_21 = arith.constant 0 : index
    %46 = vector.load %arg4[%c0_20, %c0_21] : memref<256x64xf32, #tpu.memory_space<vmem>>, vector<256x64xf32>
    %cst_22 = arith.constant dense<0.000000e+00> : vector<16x64xf32>
    %47 = tpu.matmul %45, %46, %cst_22 {dimension_numbers = #tpu.dot_dimension_numbers<[1], [0], [0], [1], [0, 0, 1, 1], [], []>} : vector<16x256xf32>, vector<256x64xf32>, vector<16x64xf32> -> vector<16x64xf32>
    %c0_23 = arith.constant 0 : index
    %c0_24 = arith.constant 0 : index
    %48 = vector.load %arg5[%c0_23, %c0_24] : memref<1x64xf32, #tpu.memory_space<vmem>>, vector<1x64xf32>
    %49 = vector.broadcast %48 : vector<1x64xf32> to vector<16x64xf32>
    %50 = arith.addf %47, %49 : vector<16x64xf32>
    %c0_25 = arith.constant 0 : index
    %c0_26 = arith.constant 0 : index
    %51 = vector.load %arg6[%c0_25, %c0_26] : memref<16x64xf32, #tpu.memory_space<vmem>>, vector<16x64xf32>
    tpu.vector_store %arg6[%c0_25, %c0_26], %50 {strides = array<i32>} : memref<16x64xf32, #tpu.memory_space<vmem>>, vector<16x64xf32>,
    return
  }
  func.func @transform_0(%arg0: i32) -> (i32, i32) {
    %c0_i32 = arith.constant 0 : i32
    %c0_i32_0 = arith.constant 0 : i32
    return %arg0, %c0_i32 : i32, i32
  }
  func.func @transform_1(%arg0: i32) -> (i32, i32) {
    %c0_i32 = arith.constant 0 : i32
    %c0_i32_0 = arith.constant 0 : i32
    %c0_i32_1 = arith.constant 0 : i32
    return %c0_i32, %c0_i32_0 : i32, i32
  }
  func.func @transform_2(%arg0: i32) -> (i32, i32) {
    %c0_i32 = arith.constant 0 : i32
    %c0_i32_0 = arith.constant 0 : i32
    %c0_i32_1 = arith.constant 0 : i32
    return %c0_i32, %c0_i32_0 : i32, i32
  }
  func.func @transform_3(%arg0: i32) -> (i32, i32) {
    %c0_i32 = arith.constant 0 : i32
    %c0_i32_0 = arith.constant 0 : i32
    %c0_i32_1 = arith.constant 0 : i32
    return %c0_i32, %c0_i32_0 : i32, i32
  }
  func.func @transform_4(%arg0: i32) -> (i32, i32) {
    %c0_i32 = arith.constant 0 : i32
    %c0_i32_0 = arith.constant 0 : i32
    %c0_i32_1 = arith.constant 0 : i32
    return %c0_i32, %c0_i32_0 : i32, i32
  }
  func.func @transform_5(%arg0: i32) -> (i32, i32) {
    %c0_i32 = arith.constant 0 : i32
    %c0_i32_0 = arith.constant 0 : i32
    return %arg0, %c0_i32 : i32, i32
  }
}

</mosaic_0001>

<llo_original>
// kernel: tpu_custom_call.1
$region0: #{tpu_custom_call.1}
  #allocation0 [shape = 'u32[]', space=smem, size = 0x4, offset = 0x4, fixed_abs, tag = 'smem constant byte address 0x4 - core index']
  #allocation1 [shape = 'u32[144,128]{1,0:T(1,128)}', space=vmem, size = 0x12000, scoped, tag = 'internal scratch']
  %s0 = inlined_call_operand.vmem [shape: f32[16,64], index: 0, kind: input, shape index: {}]
  %s1 = inlined_call_operand.vmem [shape: f32[64,256], index: 1, kind: input, shape index: {}]
  %s2 = inlined_call_operand.vmem [shape: f32[1,256], index: 2, kind: input, shape index: {}]
  %s3 = inlined_call_operand.vmem [shape: f32[256,64], index: 3, kind: input, shape index: {}]
  %s4 = inlined_call_operand.vmem [shape: f32[1,64], index: 4, kind: input, shape index: {}]
  %s5 = inlined_call_operand.hbm [shape: f32[16,64], index: 5, kind: output, shape index: {}]
  %s6 = sld [smem:[#allocation0]]
  $region30: #{tpu_custom_call.1} parent=0
    _
  %s8 = ssub.s32 1, %s6
  %s9 = scalar_select 0, %s8, %s6
  $region1: #{tpu_custom_call.1} parent=0
    #allocation2 [shape = 'u8[8192]{0}', space=vmem, size = 0x2000, scoped, tag = 'output window, operand 0, single buffered']
    #allocation3 [shape = 's32[1]{0}', space=sflag, size = 0x4, scoped, tag = 'scoped memory for tpu_custom_call.1']
    %10 = vsyncpa [#allocation3], 0
    // Predicated region
    $region2: #{tpu_custom_call.1} parent=1 // pred_check
      _
    $region3: #{tpu_custom_call.1} parent=1 // pred_check_branch
      %12 = sbr.rel (0) target = $region5
    $region4: #{tpu_custom_call.1} parent=1 // pred_region
      _
    $region5: #{tpu_custom_call.1} parent=1 // pred_fallthru
      _
    // Predicated region
    $region6: #{tpu_custom_call.1} parent=1 // pred_check
      _
    $region7: #{tpu_custom_call.1} parent=1 // pred_check_branch
      %14 = sbr.rel (0) target = $region9
    $region8: #{tpu_custom_call.1} parent=1 // pred_region
      _
    $region9: #{tpu_custom_call.1} parent=1 // pred_fallthru
      _
    // Predicated region
    $region10: #{tpu_custom_call.1} parent=1 // pred_check
      _
    $region11: #{tpu_custom_call.1} parent=1 // pred_check_branch
      %16 = sbr.rel (0) target = $region13
    $region12: #{tpu_custom_call.1} parent=1 // pred_region
      _
    $region13: #{tpu_custom_call.1} parent=1 // pred_fallthru
      _
    // Predicated region
    $region14: #{tpu_custom_call.1} parent=1 // pred_check
      _
    $region15: #{tpu_custom_call.1} parent=1 // pred_check_branch
      %18 = sbr.rel (0) target = $region17
    $region16: #{tpu_custom_call.1} parent=1 // pred_region
      _
    $region17: #{tpu_custom_call.1} parent=1 // pred_fallthru
      _
    // Predicated region
    $region18: #{tpu_custom_call.1} parent=1 // pred_check
      _
    $region19: #{tpu_custom_call.1} parent=1 // pred_check_branch
      %20 = sbr.rel (0) target = $region21
    $region20: #{tpu_custom_call.1} parent=1 // pred_region
      _
    $region21: #{tpu_custom_call.1} parent=1 // pred_fallthru
      _
    %v21 = vld [vmem:[%s0] sm:$0xff]
    %v22 = vld [vmem:[%s0 + $0x8] sm:$0xff]
    %v23 = vld [vmem:[%s1] sm:$0xff]
    %v24 = vld [vmem:[%s1 + $0x8] sm:$0xff]
    %v25 = vld [vmem:[%s1 + $0x10] sm:$0xff]
    %v26 = vld [vmem:[%s1 + $0x18] sm:$0xff]
    %v27 = vld [vmem:[%s1 + $0x20] sm:$0xff]
    %v28 = vld [vmem:[%s1 + $0x28] sm:$0xff]
    %v29 = vld [vmem:[%s1 + $0x30] sm:$0xff]
    %v30 = vld [vmem:[%s1 + $0x38] sm:$0xff]
    %v31 = vld [vmem:[%s1 + $0x40] sm:$0xff]
    %v32 = vld [vmem:[%s1 + $0x48] sm:$0xff]
    %v33 = vld [vmem:[%s1 + $0x50] sm:$0xff]
    %v34 = vld [vmem:[%s1 + $0x58] sm:$0xff]
    %v35 = vld [vmem:[%s1 + $0x60] sm:$0xff]
    %v36 = vld [vmem:[%s1 + $0x68] sm:$0xff]
    %v37 = vld [vmem:[%s1 + $0x70] sm:$0xff]
    %v38 = vld [vmem:[%s1 + $0x78] sm:$0xff]
    %v39 = vld [vmem:[%s2] sm:$0x3]
    %v41 = vlaneseq
    %v42 = vshrl.u32 %v41, 7
    %v43 = vsub.s32 0, %v42
    %v44 = vrot.slane %v39, %v43
    %v45 = vlaneseq
    %v46 = vshrl.u32 %v45, 7
    %v47 = vsub.s32 1, %v46
    %v48 = vrot.slane %v39, %v47
    %vm51 = vcmask 523264
    %v53 = vsel %vm51, %v21, 0
    %v56 = vsel %vm51, %v22, 0
    %58 = vmatprep.subr.mxu0 0.0
    %59 = vmatpush1.msra.mxu0 0.0
    %60 = vmatprep.subr.mxu0 0.0
    %61 = vmatpush1.msra.mxu0 0.0
    %62 = vmatprep.subr.mxu0 0.0
    %63 = vmatpush1.msra.mxu0 0.0
    %64 = vmatprep.subr.mxu0 0.0
    %65 = vmatpush1.msra.mxu0 0.0
    %66 = vmatprep.subr.mxu0 0.0
    %67 = vmatpush1.msra.mxu0 0.0
    %68 = vmatprep.subr.mxu0 0.0
    %69 = vmatpush1.msra.mxu0 0.0
    %70 = vmatprep.subr.mxu0 0.0
    %71 = vmatpush1.msra.mxu0 0.0
    %72 = vmatprep.subr.mxu0 0.0
    %73 = vmatpush1.msra.mxu0 0.0
    %74 = vmatprep.subr.mxu0 %v38
    %75 = vmatpush1.msra.mxu0 %v37
    %76 = vmatprep.subr.mxu0 %v36
    %77 = vmatpush1.msra.mxu0 %v35
    %78 = vmatprep.subr.mxu0 %v34
    %79 = vmatpush1.msra.mxu0 %v33
    %80 = vmatprep.subr.mxu0 %v32
    %81 = vmatpush1.msra.mxu0 %v31
    %82 = vmatprep.subr.mxu0 %v30
    %83 = vmatpush1.msra.mxu0 %v29
    %84 = vmatprep.subr.mxu0 %v28
    %85 = vmatpush1.msra.mxu0 %v27
    %86 = vmatprep.subr.mxu0 %v26
    %87 = vmatpush1.msra.mxu0 %v25
    %88 = vmatprep.subr.mxu0 %v24
    %89 = vmatpush1.msra.mxu0 %v23
    %90 = vmatprep.subr.mxu0 0.0
    %91 = vmatpush2.msra.mxu0 0.0
    %92 = vmatprep.subr.mxu0 0.0
    %93 = vmatpush2.msra.mxu0 0.0
    %94 = vmatprep.subr.mxu0 0.0
    %95 = vmatpush2.msra.mxu0 0.0
    %96 = vmatprep.subr.mxu0 0.0
    %97 = vmatpush2.msra.mxu0 0.0
    %98 = vmatprep.subr.mxu0 0.0
    %99 = vmatpush2.msra.mxu0 0.0
    %100 = vmatprep.subr.mxu0 0.0
    %101 = vmatpush2.msra.mxu0 0.0
    %102 = vmatprep.subr.mxu0 0.0
    %103 = vmatpush2.msra.mxu0 0.0
    %104 = vmatprep.subr.mxu0 0.0
    %105 = vmatpush2.msra.mxu0 0.0
    %106 = vmatprep.subr.mxu0 0.0
    %107 = vmatpush2.msra.mxu0 0.0
    %108 = vmatprep.subr.mxu0 0.0
    %109 = vmatpush2.msra.mxu0 0.0
    %110 = vmatprep.subr.mxu0 0.0
    %111 = vmatpush2.msra.mxu0 0.0
    %112 = vmatprep.subr.mxu0 0.0
    %113 = vmatpush2.msra.mxu0 0.0
    %114 = vmatprep.subr.mxu0 0.0
    %115 = vmatpush2.msra.mxu0 0.0
    %116 = vmatprep.subr.mxu0 0.0
    %117 = vmatpush2.msra.mxu0 0.0
    %118 = vmatprep.subr.mxu0 0.0
    %119 = vmatpush2.msra.mxu0 0.0
    %120 = vmatprep.subr.mxu0 0.0
    %121 = vmatpush2.msra.mxu0 0.0
    %122 = vmatprep.mubr.f32.mxu0 0.0
    %123 = vmatmul.mubr.f32.gmra.mxu0 %v53
    %v124 = vpop.f32.mrf.mxu0
    %v125 = vadd.f32 %v44, %v124
    %v126 = vpop.f32.mrf.mxu0
    %v127 = vadd.f32 %v48, %v126
    %128 = vmatprep.mubr.f32.mxu0 0.0
    %129 = vmatmul.mubr.f32.gmra.mxu0 %v56
    %v130 = vpop.f32.mrf.mxu0
    %v131 = vadd.f32 %v44, %v130
    %v132 = vpop.f32.mrf.mxu0
    %v133 = vadd.f32 %v48, %v132
    %134 = vdwg.mxu0
    %v135 = vmul.f32 %v125, 0.5
    %v136 = vmul.f32 %v127, 0.5
    %v137 = vmul.f32 %v131, 0.5
    %v138 = vmul.f32 %v133, 0.5
    %v139 = vmul.f32 %v125, 0.70710677
    %v140 = vmul.f32 %v127, 0.70710677
    %v141 = vmul.f32 %v131, 0.70710677
    %v142 = vmul.f32 %v133, 0.70710677
    %v143 = vand.u32 2147483647, %v139
    %v144 = vand.u32 2147483647, %v140
    %v145 = vand.u32 2147483647, %v141
    %v146 = vand.u32 2147483647, %v142
    %v147 = vmul.f32 %v143, 0.3275911
    %v148 = vmul.f32 %v144, 0.3275911
    %v149 = vmul.f32 %v145, 0.3275911
    %v150 = vmul.f32 %v146, 0.3275911
    %v151 = vadd.f32 %v147, 1.0
    %v152 = vadd.f32 %v148, 1.0
    %v153 = vadd.f32 %v149, 1.0
    %v154 = vadd.f32 %v150, 1.0
    %v155 = vrcp.pop %v151
    %v156 = vmul.f32 1.0, %v155
    %v157 = vrcp.pop %v152
    %v158 = vmul.f32 1.0, %v157
    %v159 = vrcp.pop %v153
    %v160 = vmul.f32 1.0, %v159
    %v161 = vrcp.pop %v154
    %v162 = vmul.f32 1.0, %v161
    %v163 = vmul.f32 %v156, 1.0614054
    %v164 = vmul.f32 %v158, 1.0614054
    %v165 = vmul.f32 %v160, 1.0614054
    %v166 = vmul.f32 %v162, 1.0614054
    %v167 = vadd.f32 %v163, -1.4531521
    %v168 = vadd.f32 %v164, -1.4531521
    %v169 = vadd.f32 %v165, -1.4531521
    %v170 = vadd.f32 %v166, -1.4531521
    %v171 = vmul.f32 %v167, %v156
    %v172 = vmul.f32 %v168, %v158
    %v173 = vmul.f32 %v169, %v160
    %v174 = vmul.f32 %v170, %v162
    %v175 = vadd.f32 %v171, 1.4214138
    %v176 = vadd.f32 %v172, 1.4214138
    %v177 = vadd.f32 %v173, 1.4214138
    %v178 = vadd.f32 %v174, 1.4214138
    %v179 = vmul.f32 %v175, %v156
    %v180 = vmul.f32 %v176, %v158
    %v181 = vmul.f32 %v177, %v160
    %v182 = vmul.f32 %v178, %v162
    %v183 = vadd.f32 %v179, -0.28449672
    %v184 = vadd.f32 %v180, -0.28449672
    %v185 = vadd.f32 %v181, -0.28449672
    %v186 = vadd.f32 %v182, -0.28449672
    %v187 = vmul.f32 %v183, %v156
    %v188 = vmul.f32 %v184, %v158
    %v189 = vmul.f32 %v185, %v160
    %v190 = vmul.f32 %v186, %v162
    %v191 = vadd.f32 %v187, 0.2548296
    %v192 = vadd.f32 %v188, 0.2548296
    %v193 = vadd.f32 %v189, 0.2548296
    %v194 = vadd.f32 %v190, 0.2548296
    %v195 = vmul.f32 %v191, %v156
    %v196 = vmul.f32 %v192, %v158
    %v197 = vmul.f32 %v193, %v160
    %v198 = vmul.f32 %v194, %v162
    %v199 = vmul.f32 %v139, %v139
    %v200 = vmul.f32 %v140, %v140
    %v201 = vmul.f32 %v141, %v141
    %v202 = vmul.f32 %v142, %v142
    %v203 = vsub.f32 0.0, %v199
    %v204 = vsub.f32 0.0, %v200
    %v205 = vsub.f32 0.0, %v201
    %v206 = vsub.f32 0.0, %v202
    %v207 = vmul.f32 %v203, 1.442695
    %v208 = vpow.pop %v207
    %v209 = vmul.f32 %v204, 1.442695
    %v210 = vpow.pop %v209
    %v211 = vmul.f32 %v205, 1.442695
    %v212 = vpow.pop %v211
    %v213 = vmul.f32 %v206, 1.442695
    %v214 = vpow.pop %v213
    %v215 = vmul.f32 %v195, %v208
    %v216 = vmul.f32 %v196, %v210
    %v217 = vmul.f32 %v197, %v212
    %v218 = vmul.f32 %v198, %v214
    %v219 = vsub.f32 1.0, %v215
    %v220 = vsub.f32 1.0, %v216
    %v221 = vsub.f32 1.0, %v217
    %v222 = vsub.f32 1.0, %v218
    %vm223 = vcmp.lt.f32.partialorder %v139, 0.0
    %vm224 = vcmp.lt.f32.partialorder %v140, 0.0
    %vm225 = vcmp.lt.f32.partialorder %v141, 0.0
    %vm226 = vcmp.lt.f32.partialorder %v142, 0.0
    %v227 = vsub.f32 0.0, %v219
    %v228 = vsub.f32 0.0, %v220
    %v229 = vsub.f32 0.0, %v221
    %v230 = vsub.f32 0.0, %v222
    %v231 = vsel %vm223, %v227, %v219
    %v232 = vsel %vm224, %v228, %v220
    %v233 = vsel %vm225, %v229, %v221
    %v234 = vsel %vm226, %v230, %v222
    %v235 = vadd.f32 %v231, 1.0
    %v236 = vadd.f32 %v232, 1.0
    %v237 = vadd.f32 %v233, 1.0
    %v238 = vadd.f32 %v234, 1.0
    %v239 = vmul.f32 %v135, %v235
    %v240 = vmul.f32 %v136, %v236
    %v241 = vmul.f32 %v137, %v237
    %v242 = vmul.f32 %v138, %v238
    %v243 = vld [vmem:[%s3] sm:$0xff]
    %v244 = vld [vmem:[%s3 + $0x8] sm:$0xff]
    %v245 = vld [vmem:[%s3 + $0x10] sm:$0xff]
    %v246 = vld [vmem:[%s3 + $0x18] sm:$0xff]
    %v247 = vld [vmem:[%s3 + $0x20] sm:$0xff]
    %v248 = vld [vmem:[%s3 + $0x28] sm:$0xff]
    %v249 = vld [vmem:[%s3 + $0x30] sm:$0xff]
    %v250 = vld [vmem:[%s3 + $0x38] sm:$0xff]
    %v251 = vld [vmem:[%s3 + $0x40] sm:$0xff]
    %v252 = vld [vmem:[%s3 + $0x48] sm:$0xff]
    %v253 = vld [vmem:[%s3 + $0x50] sm:$0xff]
    %v254 = vld [vmem:[%s3 + $0x58] sm:$0xff]
    %v255 = vld [vmem:[%s3 + $0x60] sm:$0xff]
    %v256 = vld [vmem:[%s3 + $0x68] sm:$0xff]
    %v257 = vld [vmem:[%s3 + $0x70] sm:$0xff]
    %v258 = vld [vmem:[%s3 + $0x78] sm:$0xff]
    %v259 = vld [vmem:[%s3 + $0x80] sm:$0xff]
    %v260 = vld [vmem:[%s3 + $0x88] sm:$0xff]
    %v261 = vld [vmem:[%s3 + $0x90] sm:$0xff]
    %v262 = vld [vmem:[%s3 + $0x98] sm:$0xff]
    %v263 = vld [vmem:[%s3 + $0xa0] sm:$0xff]
    %v264 = vld [vmem:[%s3 + $0xa8] sm:$0xff]
    %v265 = vld [vmem:[%s3 + $0xb0] sm:$0xff]
    %v266 = vld [vmem:[%s3 + $0xb8] sm:$0xff]
    %v267 = vld [vmem:[%s3 + $0xc0] sm:$0xff]
    %v268 = vld [vmem:[%s3 + $0xc8] sm:$0xff]
    %v269 = vld [vmem:[%s3 + $0xd0] sm:$0xff]
    %v270 = vld [vmem:[%s3 + $0xd8] sm:$0xff]
    %v271 = vld [vmem:[%s3 + $0xe0] sm:$0xff]
    %v272 = vld [vmem:[%s3 + $0xe8] sm:$0xff]
    %v273 = vld [vmem:[%s3 + $0xf0] sm:$0xff]
    %v274 = vld [vmem:[%s3 + $0xf8] sm:$0xff]
    %v275 = vld [vmem:[%s4] sm:$0x1]
    %v277 = vlaneseq
    %v278 = vshrl.u32 %v277, 7
    %v279 = vsub.s32 0, %v278
    %v280 = vrot.slane %v275, %v279
    %282 = vmatprep.subr.mxu0 0.0
    %283 = vmatpush1.msra.mxu0 %v258
    %284 = vmatprep.subr.mxu0 0.0
    %285 = vmatpush1.msra.mxu0 %v257
    %286 = vmatprep.subr.mxu0 0.0
    %287 = vmatpush1.msra.mxu0 %v256
    %288 = vmatprep.subr.mxu0 0.0
    %289 = vmatpush1.msra.mxu0 %v255
    %290 = vmatprep.subr.mxu0 0.0
    %291 = vmatpush1.msra.mxu0 %v254
    %292 = vmatprep.subr.mxu0 0.0
    %293 = vmatpush1.msra.mxu0 %v253
    %294 = vmatprep.subr.mxu0 0.0
    %295 = vmatpush1.msra.mxu0 %v252
    %296 = vmatprep.subr.mxu0 0.0
    %297 = vmatpush1.msra.mxu0 %v251
    %298 = vmatprep.subr.mxu0 0.0
    %299 = vmatpush1.msra.mxu0 %v250
    %300 = vmatprep.subr.mxu0 0.0
    %301 = vmatpush1.msra.mxu0 %v249
    %302 = vmatprep.subr.mxu0 0.0
    %303 = vmatpush1.msra.mxu0 %v248
    %304 = vmatprep.subr.mxu0 0.0
    %305 = vmatpush1.msra.mxu0 %v247
    %306 = vmatprep.subr.mxu0 0.0
    %307 = vmatpush1.msra.mxu0 %v246
    %308 = vmatprep.subr.mxu0 0.0
    %309 = vmatpush1.msra.mxu0 %v245
    %310 = vmatprep.subr.mxu0 0.0
    %311 = vmatpush1.msra.mxu0 %v244
    %312 = vmatprep.subr.mxu0 0.0
    %313 = vmatpush1.msra.mxu0 %v243
    %314 = vmatprep.subr.mxu0 0.0
    %315 = vmatpush2.msra.mxu0 %v274
    %316 = vmatprep.subr.mxu0 0.0
    %317 = vmatpush2.msra.mxu0 %v273
    %318 = vmatprep.subr.mxu0 0.0
    %319 = vmatpush2.msra.mxu0 %v272
    %320 = vmatprep.subr.mxu0 0.0
    %321 = vmatpush2.msra.mxu0 %v271
    %322 = vmatprep.subr.mxu0 0.0
    %323 = vmatpush2.msra.mxu0 %v270
    %324 = vmatprep.subr.mxu0 0.0
    %325 = vmatpush2.msra.mxu0 %v269
    %326 = vmatprep.subr.mxu0 0.0
    %327 = vmatpush2.msra.mxu0 %v268
    %328 = vmatprep.subr.mxu0 0.0
    %329 = vmatpush2.msra.mxu0 %v267
    %330 = vmatprep.subr.mxu0 0.0
    %331 = vmatpush2.msra.mxu0 %v266
    %332 = vmatprep.subr.mxu0 0.0
    %333 = vmatpush2.msra.mxu0 %v265
    %334 = vmatprep.subr.mxu0 0.0
    %335 = vmatpush2.msra.mxu0 %v264
    %336 = vmatprep.subr.mxu0 0.0
    %337 = vmatpush2.msra.mxu0 %v263
    %338 = vmatprep.subr.mxu0 0.0
    %339 = vmatpush2.msra.mxu0 %v262
    %340 = vmatprep.subr.mxu0 0.0
    %341 = vmatpush2.msra.mxu0 %v261
    %342 = vmatprep.subr.mxu0 0.0
    %343 = vmatpush2.msra.mxu0 %v260
    %344 = vmatprep.subr.mxu0 0.0
    %345 = vmatpush2.msra.mxu0 %v259
    %346 = vmatprep.mubr.f32.mxu0 %v240
    %347 = vmatmul.mubr.f32.gmra.mxu0 %v239
    %v348 = vpop.f32.mrf.mxu0
    %v349 = vadd.f32 %v280, %v348
    %v350 = vpop.f32.mrf.mxu0
    %351 = vmatprep.mubr.f32.mxu0 %v242
    %352 = vmatmul.mubr.f32.gmra.mxu0 %v241
    %v353 = vpop.f32.mrf.mxu0
    %v354 = vadd.f32 %v280, %v353
    %v355 = vpop.f32.mrf.mxu0
    %356 = vdwg.mxu0
    %357 = vst.msk [vmem:[#allocation2] sm:$0xff] %vm51, %v349
    %358 = vst.msk [vmem:[#allocation2 + $0x8] sm:$0xff] %vm51, %v354
    // Predicated region
    $region22: #{tpu_custom_call.1} parent=1 // pred_check
      _
    $region23: #{tpu_custom_call.1} parent=1 // pred_check_branch
      %360 = sbr.rel (0) target = $region25
    $region24: #{tpu_custom_call.1} parent=1 // pred_region
      %s362 = ssub.s32 256, 256
      %363 = vsyncadd [#allocation3], %s362
      %s364 = sshll.u32 [#allocation2], 4
      %s365 = int_to_ptr.vmem [resolvable:$true] %s364
      %370 = dma.vmem_to_hbm [thread:$0]  %s365, 256, %s5, [#allocation3], 128, 128, 8
    $region25: #{tpu_custom_call.1} parent=1 // pred_fallthru
      _
    // Predicated region
    $region26: #{tpu_custom_call.1} parent=1 // pred_check
      _
    $region27: #{tpu_custom_call.1} parent=1 // pred_check_branch
      %372 = sbr.rel (0) target = $region29
    $region28: #{tpu_custom_call.1} parent=1 // pred_region
      %373 = dma.done [#allocation3], 256
    $region29: #{tpu_custom_call.1} parent=1 // pred_fallthru
      _
    %374 = vsyncpa [#allocation3], 1

</llo_original>
